<compile_context>
chip_gen: v6e
topology: v6e:2x2x1
jax: 0.10.0
libtpu: 0.0.40
codegen_flags: <defaults>
</compile_context>

<pallas_src>
import jax
import jax.numpy as jnp
from jax.experimental import pallas as pl
from jax.experimental.pallas import tpu as pltpu


def _ts_classifier_kernel(x_ref, w1_ref, b1_ref, w2_ref, b2_ref,
                          w3_ref, b3_ref, w4_ref, b4_ref, o_ref):
    cdt = w1_ref.dtype                      # compute dtype (bf16 or f32)
    x = x_ref[...].astype(cdt)              # in-kernel cast (no extra HBM pass)

    # ---- encoder (MLPEncoder): Linear -> ReLU -> Linear -> ReLU ----
    h = jnp.dot(x, w1_ref[...], preferred_element_type=jnp.float32)
    h = jnp.maximum(h + b1_ref[...], 0.0)
    h = jnp.dot(h.astype(cdt), w2_ref[...], preferred_element_type=jnp.float32)
    h = jnp.maximum(h + b2_ref[...], 0.0)
    # ---- predictor (MLPPredictor): Linear -> ReLU -> Linear ----
    p = jnp.dot(h.astype(cdt), w3_ref[...], preferred_element_type=jnp.float32)
    p = jnp.maximum(p + b3_ref[...], 0.0)
    o = jnp.dot(p.astype(cdt), w4_ref[...], preferred_element_type=jnp.float32)
    o_ref[...] = (o + b4_ref[...]).astype(o_ref.dtype)


def ts_classifier_forward(x, params, *, block_batch=512,
                          compute_dtype=jnp.bfloat16):
    """x: (B, C, T) float32. Returns logits (B, num_classes) float32."""
    B, C, T = x.shape
    d_in = C * T
    w1, b1, w2, b2, w3, b3, w4, b4 = params
    hidden = w1.shape[1]
    hidden2 = w3.shape[1]
    num_classes = w4.shape[1]

    # nn.Flatten — pure metadata reshape, no pad / no cast in the wrapper.
    x2 = x.reshape(B, d_in)

    cdt = jnp.dtype(compute_dtype)
    ws = [jnp.asarray(w, cdt) for w in (w1, w2, w3, w4)]          # tiny one-time cast
    bs = [jnp.asarray(b, jnp.float32).reshape(1, -1) for b in (b1, b2, b3, b4)]

    # ---- batch tiling (dtype-aware sublane rounding; partial tiles OK) ----
    sublane = 16 if cdt == jnp.dtype(jnp.bfloat16) else 8
    if B >= sublane:
        tm = min(max(sublane, (block_batch // sublane) * sublane),
                 (B // sublane) * sublane)
    else:
        tm = B  # block dim equal to the full array dim is legal

    # ---- per-chip VMEM budget (v7x = 64 MiB/TC, v5e/v6e = 128 MiB) ----
    try:
        vmem_cap = int(pltpu.get_tpu_info().vmem_capacity_bytes)
    except Exception:
        vmem_cap = 64 << 20                       # conservative (v7x-safe)

    weight_bytes = sum(int(w.size) * w.dtype.itemsize for w in ws)
    bias_bytes = sum(int(b.size) * b.dtype.itemsize for b in bs)
    resident_bytes = 2 * (weight_bytes + bias_bytes)   # count pipeline buffers

    x_itemsize = x2.dtype.itemsize

    def _tile_bytes(t):
        x_io = 2 * t * d_in * x_itemsize              # double-buffered x tile
        o_io = 2 * t * num_classes * 4                # double-buffered out tile
        act = 4 * t * max(d_in, hidden, hidden2, num_classes) * 4  # live f32 acts
        return x_io + o_io + act

    budget = vmem_cap - (8 << 20)
    while tm > sublane and resident_bytes + _tile_bytes(tm) > budget:
        tm = max(sublane, ((tm // 2) // sublane) * sublane)
    if resident_bytes + _tile_bytes(tm) > budget:
        # TODO(synk): add a K-tiled (second grid axis over d_in, f32 accumulator)
        #             fallback so very large C*T fits v7x's 64 MiB VMEM.
        raise ValueError("TSClassifier weights too large for VMEM-resident kernel")

    vmem_limit = int(min(vmem_cap,
                         max(resident_bytes + _tile_bytes(tm) + (16 << 20),
                             32 << 20)))

    grid = (pl.cdiv(B, tm),)

    def _resident(a):
        # Same block every grid step -> loaded once, stays VMEM-resident.
        return pl.BlockSpec(a.shape, lambda i: (0,) * a.ndim)

    in_specs = [
        pl.BlockSpec((tm, d_in), lambda i: (i, 0)),   # x tile: pipelined
        _resident(ws[0]), _resident(bs[0]),
        _resident(ws[1]), _resident(bs[1]),
        _resident(ws[2]), _resident(bs[2]),
        _resident(ws[3]), _resident(bs[3]),
    ]
    out_spec = pl.BlockSpec((tm, num_classes), lambda i: (i, 0))

    flops = 2 * B * (d_in * hidden + hidden * hidden
                     + hidden * hidden2 + hidden2 * num_classes)
    bytes_accessed = (int(x2.size) * x_itemsize + weight_bytes + bias_bytes
                      + B * num_classes * 4)
    cost = pl.CostEstimate(flops=flops, transcendentals=0,
                           bytes_accessed=bytes_accessed)

    out = pl.pallas_call(
        _ts_classifier_kernel,
        out_shape=jax.ShapeDtypeStruct((B, num_classes), jnp.float32),
        grid_spec=pl.GridSpec(grid=grid, in_specs=in_specs, out_specs=out_spec),
        compiler_params=pltpu.CompilerParams(
            dimension_semantics=("parallel",),
            vmem_limit_bytes=vmem_limit),
        cost_estimate=cost,
    )(x2, ws[0], bs[0], ws[1], bs[1], ws[2], bs[2], ws[3], bs[3])

    return out


def init_params(key, d_in, hidden, hidden2, num_classes):
    """Deterministic synthetic parameters (Kaiming-uniform-like fan-in scaling)."""
    ks = jax.random.split(key, 8)

    def lin(kw, kb, fan_in, fan_out):
        bound = 1.0 / jnp.sqrt(jnp.float32(fan_in))
        w = jax.random.uniform(kw, (fan_in, fan_out), jnp.float32, -bound, bound)
        b = jax.random.uniform(kb, (1, fan_out), jnp.float32, -bound, bound)
        return w, b

    w1, b1 = lin(ks[0], ks[1], d_in, hidden)
    w2, b2 = lin(ks[2], ks[3], hidden, hidden)
    w3, b3 = lin(ks[4], ks[5], hidden, hidden2)
    w4, b4 = lin(ks[6], ks[7], hidden2, num_classes)
    return (w1, b1, w2, b2, w3, b3, w4, b4)


def reference_forward(x, params, compute_dtype=jnp.float32):
    """Pure-JAX reference mirroring the kernel's dtype/accumulation choices."""
    w1, b1, w2, b2, w3, b3, w4, b4 = params
    B = x.shape[0]
    cdt = compute_dtype

    def lin(a, w, b):
        y = jnp.dot(a.astype(cdt), w.astype(cdt),
                    preferred_element_type=jnp.float32)
        return y + b.astype(jnp.float32)

    h = x.reshape(B, -1)
    h = jnp.maximum(lin(h, w1, b1), 0.0)
    h = jnp.maximum(lin(h, w2, b2), 0.0)
    p = jnp.maximum(lin(h, w3, b3), 0.0)
    return lin(p, w4, b4)


if __name__ == "__main__":
    B, C, T = 2, 4, 8                      # batch, channels, seq length
    hidden, hidden2, num_classes = 32, 16, 5
    d_in = C * T

    key = jax.random.PRNGKey(0)
    kx, kp, kx2, kx3 = jax.random.split(key, 4)
    x = jax.random.normal(kx, (B, C, T), dtype=jnp.float32)
    params = init_params(kp, d_in, hidden, hidden2, num_classes)

    # 1) f32 path, tiny batch (tm == B < sublane; full-dim block exemption)
    out = jax.block_until_ready(
        ts_classifier_forward(x, params, compute_dtype=jnp.float32))
    ref = reference_forward(x, params, jnp.float32)
    assert out.shape == (B, num_classes)
    assert jnp.allclose(out, ref, atol=1e-4, rtol=1e-4)

    # 2) bf16 default path, larger batch (single large weight-resident tile)
    B2 = 160
    x2 = jax.random.normal(kx2, (B2, C, T), dtype=jnp.float32)
    out2 = jax.block_until_ready(ts_classifier_forward(x2, params))
    ref2 = reference_forward(x2, params, jnp.bfloat16)
    assert out2.shape == (B2, num_classes)
    assert jnp.allclose(out2, ref2, atol=2e-2, rtol=2e-2)

    # 3) bf16, multi-tile grid with a partial last tile (exercises masking)
    B3 = 200
    x3 = jax.random.normal(kx3, (B3, C, T), dtype=jnp.float32)
    out3 = jax.block_until_ready(
        ts_classifier_forward(x3, params, block_batch=64))
    ref3 = reference_forward(x3, params, jnp.bfloat16)
    assert out3.shape == (B3, num_classes)
    assert jnp.allclose(out3, ref3, atol=2e-2, rtol=2e-2)

    print("KERNEL_OK")
</pallas_src>

<mosaic_0001>
module attributes {stable_mosaic.version = 11 : i64} {
  func.func @_ts_classifier_kernel(%arg0: i32, %arg1: memref<2x32xf32, #tpu.memory_space<vmem>>, %arg2: memref<32x32xf32, #tpu.memory_space<vmem>>, %arg3: memref<1x32xf32, #tpu.memory_space<vmem>>, %arg4: memref<32x32xf32, #tpu.memory_space<vmem>>, %arg5: memref<1x32xf32, #tpu.memory_space<vmem>>, %arg6: memref<32x16xf32, #tpu.memory_space<vmem>>, %arg7: memref<1x16xf32, #tpu.memory_space<vmem>>, %arg8: memref<16x5xf32, #tpu.memory_space<vmem>>, %arg9: memref<1x5xf32, #tpu.memory_space<vmem>>, %arg10: memref<2x5xf32, #tpu.memory_space<vmem>>) attributes {dimension_semantics = [#tpu.dimension_semantics<parallel>], iteration_bounds = array<i64: 1>, scalar_prefetch = 0 : i64, scratch_operands = 0 : i64, tpu.core_type = #tpu.core_type<tc>, window_params = [{transform_indices = @transform_0, window_bounds = array<i64: 2, 32>}, {pipeline_mode = #tpu.pipeline_mode<synchronous>, transform_indices = @transform_1, window_bounds = array<i64: 32, 32>}, {pipeline_mode = #tpu.pipeline_mode<synchronous>, transform_indices = @transform_2, window_bounds = array<i64: 1, 32>}, {pipeline_mode = #tpu.pipeline_mode<synchronous>, transform_indices = @transform_3, window_bounds = array<i64: 32, 32>}, {pipeline_mode = #tpu.pipeline_mode<synchronous>, transform_indices = @transform_4, window_bounds = array<i64: 1, 32>}, {pipeline_mode = #tpu.pipeline_mode<synchronous>, transform_indices = @transform_5, window_bounds = array<i64: 32, 16>}, {pipeline_mode = #tpu.pipeline_mode<synchronous>, transform_indices = @transform_6, window_bounds = array<i64: 1, 16>}, {pipeline_mode = #tpu.pipeline_mode<synchronous>, transform_indices = @transform_7, window_bounds = array<i64: 16, 5>}, {pipeline_mode = #tpu.pipeline_mode<synchronous>, transform_indices = @transform_8, window_bounds = array<i64: 1, 5>}, {transform_indices = @transform_9, window_bounds = array<i64: 2, 5>}]} {
    %c0 = arith.constant 0 : index
    %c0_0 = arith.constant 0 : index
    %0 = vector.load %arg1[%c0, %c0_0] : memref<2x32xf32, #tpu.memory_space<vmem>>, vector<2x32xf32>
    %c0_1 = arith.constant 0 : index
    %c0_2 = arith.constant 0 : index
    %1 = vector.load %arg2[%c0_1, %c0_2] : memref<32x32xf32, #tpu.memory_space<vmem>>, vector<32x32xf32>
    %cst = arith.constant dense<0.000000e+00> : vector<2x32xf32>
    %2 = tpu.matmul %0, %1, %cst {dimension_numbers = #tpu.dot_dimension_numbers<[1], [0], [0], [1], [0, 0, 1, 1], [], []>} : vector<2x32xf32>, vector<32x32xf32>, vector<2x32xf32> -> vector<2x32xf32>
    %c0_3 = arith.constant 0 : index
    %c0_4 = arith.constant 0 : index
    %3 = vector.load %arg3[%c0_3, %c0_4] : memref<1x32xf32, #tpu.memory_space<vmem>>, vector<1x32xf32>
    %4 = vector.broadcast %3 : vector<1x32xf32> to vector<2x32xf32>
    %5 = arith.addf %2, %4 : vector<2x32xf32>
    %cst_5 = arith.constant 0.000000e+00 : f32
    %6 = vector.broadcast %cst_5 : f32 to vector<2x32xf32>
    %7 = arith.maximumf %5, %6 : vector<2x32xf32>
    %c0_6 = arith.constant 0 : index
    %c0_7 = arith.constant 0 : index
    %8 = vector.load %arg4[%c0_6, %c0_7] : memref<32x32xf32, #tpu.memory_space<vmem>>, vector<32x32xf32>
    %cst_8 = arith.constant dense<0.000000e+00> : vector<2x32xf32>
    %9 = tpu.matmul %7, %8, %cst_8 {dimension_numbers = #tpu.dot_dimension_numbers<[1], [0], [0], [1], [0, 0, 1, 1], [], []>} : vector<2x32xf32>, vector<32x32xf32>, vector<2x32xf32> -> vector<2x32xf32>
    %c0_9 = arith.constant 0 : index
    %c0_10 = arith.constant 0 : index
    %10 = vector.load %arg5[%c0_9, %c0_10] : memref<1x32xf32, #tpu.memory_space<vmem>>, vector<1x32xf32>
    %11 = vector.broadcast %10 : vector<1x32xf32> to vector<2x32xf32>
    %12 = arith.addf %9, %11 : vector<2x32xf32>
    %cst_11 = arith.constant 0.000000e+00 : f32
    %13 = vector.broadcast %cst_11 : f32 to vector<2x32xf32>
    %14 = arith.maximumf %12, %13 : vector<2x32xf32>
    %c0_12 = arith.constant 0 : index
    %c0_13 = arith.constant 0 : index
    %15 = vector.load %arg6[%c0_12, %c0_13] : memref<32x16xf32, #tpu.memory_space<vmem>>, vector<32x16xf32>
    %cst_14 = arith.constant dense<0.000000e+00> : vector<2x16xf32>
    %16 = tpu.matmul %14, %15, %cst_14 {dimension_numbers = #tpu.dot_dimension_numbers<[1], [0], [0], [1], [0, 0, 1, 1], [], []>} : vector<2x32xf32>, vector<32x16xf32>, vector<2x16xf32> -> vector<2x16xf32>
    %c0_15 = arith.constant 0 : index
    %c0_16 = arith.constant 0 : index
    %17 = vector.load %arg7[%c0_15, %c0_16] : memref<1x16xf32, #tpu.memory_space<vmem>>, vector<1x16xf32>
    %18 = vector.broadcast %17 : vector<1x16xf32> to vector<2x16xf32>
    %19 = arith.addf %16, %18 : vector<2x16xf32>
    %cst_17 = arith.constant 0.000000e+00 : f32
    %20 = vector.broadcast %cst_17 : f32 to vector<2x16xf32>
    %21 = arith.maximumf %19, %20 : vector<2x16xf32>
    %c0_18 = arith.constant 0 : index
    %c0_19 = arith.constant 0 : index
    %22 = vector.load %arg8[%c0_18, %c0_19] : memref<16x5xf32, #tpu.memory_space<vmem>>, vector<16x5xf32>
    %cst_20 = arith.constant dense<0.000000e+00> : vector<2x5xf32>
    %23 = tpu.matmul %21, %22, %cst_20 {dimension_numbers = #tpu.dot_dimension_numbers<[1], [0], [0], [1], [0, 0, 1, 1], [], []>} : vector<2x16xf32>, vector<16x5xf32>, vector<2x5xf32> -> vector<2x5xf32>
    %c0_21 = arith.constant 0 : index
    %c0_22 = arith.constant 0 : index
    %24 = vector.load %arg9[%c0_21, %c0_22] : memref<1x5xf32, #tpu.memory_space<vmem>>, vector<1x5xf32>
    %25 = vector.broadcast %24 : vector<1x5xf32> to vector<2x5xf32>
    %26 = arith.addf %23, %25 : vector<2x5xf32>
    %c0_23 = arith.constant 0 : index
    %c0_24 = arith.constant 0 : index
    %27 = vector.load %arg10[%c0_23, %c0_24] : memref<2x5xf32, #tpu.memory_space<vmem>>, vector<2x5xf32>
    tpu.vector_store %arg10[%c0_23, %c0_24], %26 {strides = array<i32>} : memref<2x5xf32, #tpu.memory_space<vmem>>, vector<2x5xf32>,
    return
  }
  func.func @transform_0(%arg0: i32) -> (i32, i32) {
    %c0_i32 = arith.constant 0 : i32
    %c0_i32_0 = arith.constant 0 : i32
    return %arg0, %c0_i32 : i32, i32
  }
  func.func @transform_1(%arg0: i32) -> (i32, i32) {
    %c0_i32 = arith.constant 0 : i32
    %c0_i32_0 = arith.constant 0 : i32
    %c0_i32_1 = arith.constant 0 : i32
    return %c0_i32, %c0_i32_0 : i32, i32
  }
  func.func @transform_2(%arg0: i32) -> (i32, i32) {
    %c0_i32 = arith.constant 0 : i32
    %c0_i32_0 = arith.constant 0 : i32
    %c0_i32_1 = arith.constant 0 : i32
    return %c0_i32, %c0_i32_0 : i32, i32
  }
  func.func @transform_3(%arg0: i32) -> (i32, i32) {
    %c0_i32 = arith.constant 0 : i32
    %c0_i32_0 = arith.constant 0 : i32
    %c0_i32_1 = arith.constant 0 : i32
    return %c0_i32, %c0_i32_0 : i32, i32
  }
  func.func @transform_4(%arg0: i32) -> (i32, i32) {
    %c0_i32 = arith.constant 0 : i32
    %c0_i32_0 = arith.constant 0 : i32
    %c0_i32_1 = arith.constant 0 : i32
    return %c0_i32, %c0_i32_0 : i32, i32
  }
  func.func @transform_5(%arg0: i32) -> (i32, i32) {
    %c0_i32 = arith.constant 0 : i32
    %c0_i32_0 = arith.constant 0 : i32
    %c0_i32_1 = arith.constant 0 : i32
    return %c0_i32, %c0_i32_0 : i32, i32
  }
  func.func @transform_6(%arg0: i32) -> (i32, i32) {
    %c0_i32 = arith.constant 0 : i32
    %c0_i32_0 = arith.constant 0 : i32
    %c0_i32_1 = arith.constant 0 : i32
    return %c0_i32, %c0_i32_0 : i32, i32
  }
  func.func @transform_7(%arg0: i32) -> (i32, i32) {
    %c0_i32 = arith.constant 0 : i32
    %c0_i32_0 = arith.constant 0 : i32
    %c0_i32_1 = arith.constant 0 : i32
    return %c0_i32, %c0_i32_0 : i32, i32
  }
  func.func @transform_8(%arg0: i32) -> (i32, i32) {
    %c0_i32 = arith.constant 0 : i32
    %c0_i32_0 = arith.constant 0 : i32
    %c0_i32_1 = arith.constant 0 : i32
    return %c0_i32, %c0_i32_0 : i32, i32
  }
  func.func @transform_9(%arg0: i32) -> (i32, i32) {
    %c0_i32 = arith.constant 0 : i32
    %c0_i32_0 = arith.constant 0 : i32
    return %arg0, %c0_i32 : i32, i32
  }
}

</mosaic_0001>

<llo_original>
// kernel: tpu_custom_call.1
$region0: #{tpu_custom_call.1}
  #allocation0 [shape = 'u32[]', space=smem, size = 0x4, offset = 0x4, fixed_abs, tag = 'smem constant byte address 0x4 - core index']
  #allocation1 [shape = 'u32[144,128]{1,0:T(1,128)}', space=vmem, size = 0x12000, scoped, tag = 'internal scratch']
  %s0 = inlined_call_operand.hbm [shape: f32[2,32], index: 0, kind: input, shape index: {}]
  %s1 = inlined_call_operand.vmem [shape: f32[32,32], index: 1, kind: input, shape index: {}]
  %s2 = inlined_call_operand.vmem [shape: f32[1,32], index: 2, kind: input, shape index: {}]
  %s3 = inlined_call_operand.vmem [shape: f32[32,32], index: 3, kind: input, shape index: {}]
  %s4 = inlined_call_operand.hbm [shape: f32[1,32], index: 4, kind: input, shape index: {}]
  %s5 = inlined_call_operand.vmem [shape: f32[32,16], index: 5, kind: input, shape index: {}]
  %s6 = inlined_call_operand.vmem [shape: f32[1,16], index: 6, kind: input, shape index: {}]
  %s7 = inlined_call_operand.vmem [shape: f32[16,5], index: 7, kind: input, shape index: {}]
  %s8 = inlined_call_operand.vmem [shape: f32[1,5], index: 8, kind: input, shape index: {}]
  %s9 = inlined_call_operand.hbm [shape: f32[2,5], index: 9, kind: output, shape index: {}]
  %s10 = sld [smem:[#allocation0]]
  $region54: #{tpu_custom_call.1} parent=0
    _
  %s12 = ssub.s32 1, %s10
  %s13 = scalar_select 0, %s12, %s10
  $region1: #{tpu_custom_call.1} parent=0
    #allocation2 [shape = 'u8[1024]{0}', space=vmem, size = 0x400, scoped, tag = 'input window, operand 0, single buffered']
    #allocation3 [shape = 's32[1]{0}', space=sflag, size = 0x4, scoped, tag = 'scoped memory for tpu_custom_call.1']
    #allocation4 [shape = 's32[1]{0}', space=sflag, size = 0x4, scoped, tag = 'scoped memory for tpu_custom_call.1']
    #allocation5 [shape = 'u8[512]{0}', space=vmem, size = 0x400, scoped, tag = 'input window, operand 4, single buffered']
    #allocation6 [shape = 's32[1]{0}', space=sflag, size = 0x4, scoped, tag = 'scoped memory for tpu_custom_call.1']
    #allocation7 [shape = 'u8[1024]{0}', space=vmem, size = 0x400, scoped, tag = 'output window, operand 0, single buffered']
    %14 = vsyncpa [#allocation3], 0
    %15 = vsyncpa [#allocation6], 0
    %16 = vsyncpa [#allocation4], 0
    // Predicated region
    $region2: #{tpu_custom_call.1} parent=1 // pred_check
      _
    $region3: #{tpu_custom_call.1} parent=1 // pred_check_branch
      %18 = sbr.rel (0) target = $region5
    $region4: #{tpu_custom_call.1} parent=1 // pred_region
      %s20 = ssub.s32 32, 32
      %21 = vsyncadd [#allocation3], %s20
      %s23 = sshll.u32 [#allocation2], 4
      %s24 = int_to_ptr.vmem [resolvable:$true] %s23
      %26 = dma.hbm_to_vmem [thread:$0]  %s0, 32, %s24, [#allocation3]
    $region5: #{tpu_custom_call.1} parent=1 // pred_fallthru
      _
    // Predicated region
    $region6: #{tpu_custom_call.1} parent=1 // pred_check
      _
    $region7: #{tpu_custom_call.1} parent=1 // pred_check_branch
      %28 = sbr.rel (0) target = $region9
    $region8: #{tpu_custom_call.1} parent=1 // pred_region
      _
    $region9: #{tpu_custom_call.1} parent=1 // pred_fallthru
      _
    // Predicated region
    $region10: #{tpu_custom_call.1} parent=1 // pred_check
      _
    $region11: #{tpu_custom_call.1} parent=1 // pred_check_branch
      %30 = sbr.rel (0) target = $region13
    $region12: #{tpu_custom_call.1} parent=1 // pred_region
      _
    $region13: #{tpu_custom_call.1} parent=1 // pred_fallthru
      _
    // Predicated region
    $region14: #{tpu_custom_call.1} parent=1 // pred_check
      _
    $region15: #{tpu_custom_call.1} parent=1 // pred_check_branch
      %32 = sbr.rel (0) target = $region17
    $region16: #{tpu_custom_call.1} parent=1 // pred_region
      _
    $region17: #{tpu_custom_call.1} parent=1 // pred_fallthru
      _
    // Predicated region
    $region18: #{tpu_custom_call.1} parent=1 // pred_check
      _
    $region19: #{tpu_custom_call.1} parent=1 // pred_check_branch
      %34 = sbr.rel (0) target = $region21
    $region20: #{tpu_custom_call.1} parent=1 // pred_region
      %s36 = ssub.s32 16, 16
      %37 = vsyncadd [#allocation6], %s36
      %s39 = sshll.u32 [#allocation5], 4
      %s40 = int_to_ptr.vmem [resolvable:$true] %s39
      %42 = dma.hbm_to_vmem [thread:$0]  %s4, 16, %s40, [#allocation6]
    $region21: #{tpu_custom_call.1} parent=1 // pred_fallthru
      _
    // Predicated region
    $region22: #{tpu_custom_call.1} parent=1 // pred_check
      _
    $region23: #{tpu_custom_call.1} parent=1 // pred_check_branch
      %44 = sbr.rel (0) target = $region25
    $region24: #{tpu_custom_call.1} parent=1 // pred_region
      _
    $region25: #{tpu_custom_call.1} parent=1 // pred_fallthru
      _
    // Predicated region
    $region26: #{tpu_custom_call.1} parent=1 // pred_check
      _
    $region27: #{tpu_custom_call.1} parent=1 // pred_check_branch
      %46 = sbr.rel (0) target = $region29
    $region28: #{tpu_custom_call.1} parent=1 // pred_region
      _
    $region29: #{tpu_custom_call.1} parent=1 // pred_fallthru
      _
    // Predicated region
    $region30: #{tpu_custom_call.1} parent=1 // pred_check
      _
    $region31: #{tpu_custom_call.1} parent=1 // pred_check_branch
      %48 = sbr.rel (0) target = $region33
    $region32: #{tpu_custom_call.1} parent=1 // pred_region
      _
    $region33: #{tpu_custom_call.1} parent=1 // pred_fallthru
      _
    // Predicated region
    $region34: #{tpu_custom_call.1} parent=1 // pred_check
      _
    $region35: #{tpu_custom_call.1} parent=1 // pred_check_branch
      %50 = sbr.rel (0) target = $region37
    $region36: #{tpu_custom_call.1} parent=1 // pred_region
      _
    $region37: #{tpu_custom_call.1} parent=1 // pred_fallthru
      _
    // Predicated region
    $region38: #{tpu_custom_call.1} parent=1 // pred_check
      _
    $region39: #{tpu_custom_call.1} parent=1 // pred_check_branch
      %52 = sbr.rel (0) target = $region41
    $region40: #{tpu_custom_call.1} parent=1 // pred_region
      %53 = dma.done [#allocation3], 32
    $region41: #{tpu_custom_call.1} parent=1 // pred_fallthru
      _
    // Predicated region
    $region42: #{tpu_custom_call.1} parent=1 // pred_check
      _
    $region43: #{tpu_custom_call.1} parent=1 // pred_check_branch
      %55 = sbr.rel (0) target = $region45
    $region44: #{tpu_custom_call.1} parent=1 // pred_region
      %56 = dma.done [#allocation6], 16
    $region45: #{tpu_custom_call.1} parent=1 // pred_fallthru
      _
    %v57 = vld [vmem:[#allocation2] sm:$0x3]
    %v58 = vld [vmem:[%s1] sm:$0xff]
    %v59 = vld [vmem:[%s1 + $0x8] sm:$0xff]
    %v60 = vld [vmem:[%s1 + $0x10] sm:$0xff]
    %v61 = vld [vmem:[%s1 + $0x18] sm:$0xff]
    %v62 = vld [vmem:[%s2] sm:$0x1]
    %v64 = vlaneseq
    %v65 = vshrl.u32 %v64, 7
    %v66 = vsub.s32 0, %v65
    %v67 = vrot.slane %v62, %v66
    %vm69 = vcmask 261120
    %v71 = vsel %vm69, %v57, 0
    %73 = vmatprep.subr.mxu0 0.0
    %74 = vmatpush1.msra.mxu0 0.0
    %75 = vmatprep.subr.mxu0 0.0
    %76 = vmatpush1.msra.mxu0 0.0
    %77 = vmatprep.subr.mxu0 0.0
    %78 = vmatpush1.msra.mxu0 0.0
    %79 = vmatprep.subr.mxu0 0.0
    %80 = vmatpush1.msra.mxu0 0.0
    %81 = vmatprep.subr.mxu0 0.0
    %82 = vmatpush1.msra.mxu0 0.0
    %83 = vmatprep.subr.mxu0 0.0
    %84 = vmatpush1.msra.mxu0 0.0
    %85 = vmatprep.subr.mxu0 0.0
    %86 = vmatpush1.msra.mxu0 0.0
    %87 = vmatprep.subr.mxu0 0.0
    %88 = vmatpush1.msra.mxu0 0.0
    %89 = vmatprep.subr.mxu0 0.0
    %90 = vmatpush1.msra.mxu0 0.0
    %91 = vmatprep.subr.mxu0 0.0
    %92 = vmatpush1.msra.mxu0 0.0
    %93 = vmatprep.subr.mxu0 0.0
    %94 = vmatpush1.msra.mxu0 0.0
    %95 = vmatprep.subr.mxu0 0.0
    %96 = vmatpush1.msra.mxu0 0.0
    %97 = vmatprep.subr.mxu0 0.0
    %98 = vmatpush1.msra.mxu0 %v61
    %99 = vmatprep.subr.mxu0 0.0
    %100 = vmatpush1.msra.mxu0 %v60
    %101 = vmatprep.subr.mxu0 0.0
    %102 = vmatpush1.msra.mxu0 %v59
    %103 = vmatprep.subr.mxu0 0.0
    %104 = vmatpush1.msra.mxu0 %v58
    %105 = vmatprep.subr.mxu0 0.0
    %106 = vmatpush2.msra.mxu0 0.0
    %107 = vmatprep.subr.mxu0 0.0
    %108 = vmatpush2.msra.mxu0 0.0
    %109 = vmatprep.subr.mxu0 0.0
    %110 = vmatpush2.msra.mxu0 0.0
    %111 = vmatprep.subr.mxu0 0.0
    %112 = vmatpush2.msra.mxu0 0.0
    %113 = vmatprep.subr.mxu0 0.0
    %114 = vmatpush2.msra.mxu0 0.0
    %115 = vmatprep.subr.mxu0 0.0
    %116 = vmatpush2.msra.mxu0 0.0
    %117 = vmatprep.subr.mxu0 0.0
    %118 = vmatpush2.msra.mxu0 0.0
    %119 = vmatprep.subr.mxu0 0.0
    %120 = vmatpush2.msra.mxu0 0.0
    %121 = vmatprep.subr.mxu0 0.0
    %122 = vmatpush2.msra.mxu0 0.0
    %123 = vmatprep.subr.mxu0 0.0
    %124 = vmatpush2.msra.mxu0 0.0
    %125 = vmatprep.subr.mxu0 0.0
    %126 = vmatpush2.msra.mxu0 0.0
    %127 = vmatprep.subr.mxu0 0.0
    %128 = vmatpush2.msra.mxu0 0.0
    %129 = vmatprep.subr.mxu0 0.0
    %130 = vmatpush2.msra.mxu0 0.0
    %131 = vmatprep.subr.mxu0 0.0
    %132 = vmatpush2.msra.mxu0 0.0
    %133 = vmatprep.subr.mxu0 0.0
    %134 = vmatpush2.msra.mxu0 0.0
    %135 = vmatprep.subr.mxu0 0.0
    %136 = vmatpush2.msra.mxu0 0.0
    %137 = vmatprep.mubr.f32.mxu0 0.0
    %138 = vmatmul.mubr.f32.gmra.mxu0 %v71
    %v139 = vpop.f32.mrf.mxu0
    %v140 = vadd.f32 %v67, %v139
    %v141 = vpop.f32.mrf.mxu0
    %142 = vdwg.mxu0
    %v143 = vmax.f32 %v140, 0.0
    %v144 = vld [vmem:[%s3] sm:$0xff]
    %v145 = vld [vmem:[%s3 + $0x8] sm:$0xff]
    %v146 = vld [vmem:[%s3 + $0x10] sm:$0xff]
    %v147 = vld [vmem:[%s3 + $0x18] sm:$0xff]
    %v148 = vld [vmem:[#allocation5] sm:$0x1]
    %v150 = vlaneseq
    %v151 = vshrl.u32 %v150, 7
    %v152 = vsub.s32 0, %v151
    %v153 = vrot.slane %v148, %v152
    %v156 = vsel %vm69, %v143, 0
    %158 = vmatprep.subr.mxu0 0.0
    %159 = vmatpush1.msra.mxu0 0.0
    %160 = vmatprep.subr.mxu0 0.0
    %161 = vmatpush1.msra.mxu0 0.0
    %162 = vmatprep.subr.mxu0 0.0
    %163 = vmatpush1.msra.mxu0 0.0
    %164 = vmatprep.subr.mxu0 0.0
    %165 = vmatpush1.msra.mxu0 0.0
    %166 = vmatprep.subr.mxu0 0.0
    %167 = vmatpush1.msra.mxu0 0.0
    %168 = vmatprep.subr.mxu0 0.0
    %169 = vmatpush1.msra.mxu0 0.0
    %170 = vmatprep.subr.mxu0 0.0
    %171 = vmatpush1.msra.mxu0 0.0
    %172 = vmatprep.subr.mxu0 0.0
    %173 = vmatpush1.msra.mxu0 0.0
    %174 = vmatprep.subr.mxu0 0.0
    %175 = vmatpush1.msra.mxu0 0.0
    %176 = vmatprep.subr.mxu0 0.0
    %177 = vmatpush1.msra.mxu0 0.0
    %178 = vmatprep.subr.mxu0 0.0
    %179 = vmatpush1.msra.mxu0 0.0
    %180 = vmatprep.subr.mxu0 0.0
    %181 = vmatpush1.msra.mxu0 0.0
    %182 = vmatprep.subr.mxu0 0.0
    %183 = vmatpush1.msra.mxu0 %v147
    %184 = vmatprep.subr.mxu0 0.0
    %185 = vmatpush1.msra.mxu0 %v146
    %186 = vmatprep.subr.mxu0 0.0
    %187 = vmatpush1.msra.mxu0 %v145
    %188 = vmatprep.subr.mxu0 0.0
    %189 = vmatpush1.msra.mxu0 %v144
    %190 = vmatprep.subr.mxu0 0.0
    %191 = vmatpush2.msra.mxu0 0.0
    %192 = vmatprep.subr.mxu0 0.0
    %193 = vmatpush2.msra.mxu0 0.0
    %194 = vmatprep.subr.mxu0 0.0
    %195 = vmatpush2.msra.mxu0 0.0
    %196 = vmatprep.subr.mxu0 0.0
    %197 = vmatpush2.msra.mxu0 0.0
    %198 = vmatprep.subr.mxu0 0.0
    %199 = vmatpush2.msra.mxu0 0.0
    %200 = vmatprep.subr.mxu0 0.0
    %201 = vmatpush2.msra.mxu0 0.0
    %202 = vmatprep.subr.mxu0 0.0
    %203 = vmatpush2.msra.mxu0 0.0
    %204 = vmatprep.subr.mxu0 0.0
    %205 = vmatpush2.msra.mxu0 0.0
    %206 = vmatprep.subr.mxu0 0.0
    %207 = vmatpush2.msra.mxu0 0.0
    %208 = vmatprep.subr.mxu0 0.0
    %209 = vmatpush2.msra.mxu0 0.0
    %210 = vmatprep.subr.mxu0 0.0
    %211 = vmatpush2.msra.mxu0 0.0
    %212 = vmatprep.subr.mxu0 0.0
    %213 = vmatpush2.msra.mxu0 0.0
    %214 = vmatprep.subr.mxu0 0.0
    %215 = vmatpush2.msra.mxu0 0.0
    %216 = vmatprep.subr.mxu0 0.0
    %217 = vmatpush2.msra.mxu0 0.0
    %218 = vmatprep.subr.mxu0 0.0
    %219 = vmatpush2.msra.mxu0 0.0
    %220 = vmatprep.subr.mxu0 0.0
    %221 = vmatpush2.msra.mxu0 0.0
    %222 = vmatprep.mubr.f32.mxu0 0.0
    %223 = vmatmul.mubr.f32.gmra.mxu0 %v156
    %v224 = vpop.f32.mrf.mxu0
    %v225 = vadd.f32 %v153, %v224
    %v226 = vpop.f32.mrf.mxu0
    %227 = vdwg.mxu0
    %v228 = vmax.f32 %v225, 0.0
    %v229 = vld [vmem:[%s5] sm:$0xff]
    %v230 = vld [vmem:[%s5 + $0x8] sm:$0xff]
    %v231 = vld [vmem:[%s5 + $0x10] sm:$0xff]
    %v232 = vld [vmem:[%s5 + $0x18] sm:$0xff]
    %v233 = vld [vmem:[%s6] sm:$0x1]
    %v235 = vlaneseq
    %v236 = vshrl.u32 %v235, 7
    %v237 = vsub.s32 0, %v236
    %v238 = vrot.slane %v233, %v237
    %v241 = vsel %vm69, %v228, 0
    %243 = vmatprep.subr.mxu0 0.0
    %244 = vmatpush1.msra.mxu0 0.0
    %245 = vmatprep.subr.mxu0 0.0
    %246 = vmatpush1.msra.mxu0 0.0
    %247 = vmatprep.subr.mxu0 0.0
    %248 = vmatpush1.msra.mxu0 0.0
    %249 = vmatprep.subr.mxu0 0.0
    %250 = vmatpush1.msra.mxu0 0.0
    %251 = vmatprep.subr.mxu0 0.0
    %252 = vmatpush1.msra.mxu0 0.0
    %253 = vmatprep.subr.mxu0 0.0
    %254 = vmatpush1.msra.mxu0 0.0
    %255 = vmatprep.subr.mxu0 0.0
    %256 = vmatpush1.msra.mxu0 0.0
    %257 = vmatprep.subr.mxu0 0.0
    %258 = vmatpush1.msra.mxu0 0.0
    %259 = vmatprep.subr.mxu0 0.0
    %260 = vmatpush1.msra.mxu0 0.0
    %261 = vmatprep.subr.mxu0 0.0
    %262 = vmatpush1.msra.mxu0 0.0
    %263 = vmatprep.subr.mxu0 0.0
    %264 = vmatpush1.msra.mxu0 0.0
    %265 = vmatprep.subr.mxu0 0.0
    %266 = vmatpush1.msra.mxu0 0.0
    %267 = vmatprep.subr.mxu0 0.0
    %268 = vmatpush1.msra.mxu0 %v232
    %269 = vmatprep.subr.mxu0 0.0
    %270 = vmatpush1.msra.mxu0 %v231
    %271 = vmatprep.subr.mxu0 0.0
    %272 = vmatpush1.msra.mxu0 %v230
    %273 = vmatprep.subr.mxu0 0.0
    %274 = vmatpush1.msra.mxu0 %v229
    %275 = vmatprep.subr.mxu0 0.0
    %276 = vmatpush2.msra.mxu0 0.0
    %277 = vmatprep.subr.mxu0 0.0
    %278 = vmatpush2.msra.mxu0 0.0
    %279 = vmatprep.subr.mxu0 0.0
    %280 = vmatpush2.msra.mxu0 0.0
    %281 = vmatprep.subr.mxu0 0.0
    %282 = vmatpush2.msra.mxu0 0.0
    %283 = vmatprep.subr.mxu0 0.0
    %284 = vmatpush2.msra.mxu0 0.0
    %285 = vmatprep.subr.mxu0 0.0
    %286 = vmatpush2.msra.mxu0 0.0
    %287 = vmatprep.subr.mxu0 0.0
    %288 = vmatpush2.msra.mxu0 0.0
    %289 = vmatprep.subr.mxu0 0.0
    %290 = vmatpush2.msra.mxu0 0.0
    %291 = vmatprep.subr.mxu0 0.0
    %292 = vmatpush2.msra.mxu0 0.0
    %293 = vmatprep.subr.mxu0 0.0
    %294 = vmatpush2.msra.mxu0 0.0
    %295 = vmatprep.subr.mxu0 0.0
    %296 = vmatpush2.msra.mxu0 0.0
    %297 = vmatprep.subr.mxu0 0.0
    %298 = vmatpush2.msra.mxu0 0.0
    %299 = vmatprep.subr.mxu0 0.0
    %300 = vmatpush2.msra.mxu0 0.0
    %301 = vmatprep.subr.mxu0 0.0
    %302 = vmatpush2.msra.mxu0 0.0
    %303 = vmatprep.subr.mxu0 0.0
    %304 = vmatpush2.msra.mxu0 0.0
    %305 = vmatprep.subr.mxu0 0.0
    %306 = vmatpush2.msra.mxu0 0.0
    %307 = vmatprep.mubr.f32.mxu0 0.0
    %308 = vmatmul.mubr.f32.gmra.mxu0 %v241
    %v309 = vpop.f32.mrf.mxu0
    %v310 = vadd.f32 %v238, %v309
    %v311 = vpop.f32.mrf.mxu0
    %312 = vdwg.mxu0
    %v313 = vmax.f32 %v310, 0.0
    %v314 = vld [vmem:[%s7] sm:$0xff]
    %v315 = vld [vmem:[%s7 + $0x8] sm:$0xff]
    %v316 = vld [vmem:[%s8] sm:$0x1]
    %v318 = vlaneseq
    %v319 = vshrl.u32 %v318, 7
    %v320 = vsub.s32 0, %v319
    %v321 = vrot.slane %v316, %v320
    %vm323 = vcmask 130048
    %v325 = vsel %vm323, %v313, 0
    %327 = vmatprep.subr.mxu0 0.0
    %328 = vmatpush1.msra.mxu0 0.0
    %329 = vmatprep.subr.mxu0 0.0
    %330 = vmatpush1.msra.mxu0 0.0
    %331 = vmatprep.subr.mxu0 0.0
    %332 = vmatpush1.msra.mxu0 0.0
    %333 = vmatprep.subr.mxu0 0.0
    %334 = vmatpush1.msra.mxu0 0.0
    %335 = vmatprep.subr.mxu0 0.0
    %336 = vmatpush1.msra.mxu0 0.0
    %337 = vmatprep.subr.mxu0 0.0
    %338 = vmatpush1.msra.mxu0 0.0
    %339 = vmatprep.subr.mxu0 0.0
    %340 = vmatpush1.msra.mxu0 0.0
    %341 = vmatprep.subr.mxu0 0.0
    %342 = vmatpush1.msra.mxu0 0.0
    %343 = vmatprep.subr.mxu0 0.0
    %344 = vmatpush1.msra.mxu0 0.0
    %345 = vmatprep.subr.mxu0 0.0
    %346 = vmatpush1.msra.mxu0 0.0
    %347 = vmatprep.subr.mxu0 0.0
    %348 = vmatpush1.msra.mxu0 0.0
    %349 = vmatprep.subr.mxu0 0.0
    %350 = vmatpush1.msra.mxu0 0.0
    %351 = vmatprep.subr.mxu0 0.0
    %352 = vmatpush1.msra.mxu0 0.0
    %353 = vmatprep.subr.mxu0 0.0
    %354 = vmatpush1.msra.mxu0 0.0
    %355 = vmatprep.subr.mxu0 0.0
    %356 = vmatpush1.msra.mxu0 %v315
    %357 = vmatprep.subr.mxu0 0.0
    %358 = vmatpush1.msra.mxu0 %v314
    %359 = vmatprep.subr.mxu0 0.0
    %360 = vmatpush2.msra.mxu0 0.0
    %361 = vmatprep.subr.mxu0 0.0
    %362 = vmatpush2.msra.mxu0 0.0
    %363 = vmatprep.subr.mxu0 0.0
    %364 = vmatpush2.msra.mxu0 0.0
    %365 = vmatprep.subr.mxu0 0.0
    %366 = vmatpush2.msra.mxu0 0.0
    %367 = vmatprep.subr.mxu0 0.0
    %368 = vmatpush2.msra.mxu0 0.0
    %369 = vmatprep.subr.mxu0 0.0
    %370 = vmatpush2.msra.mxu0 0.0
    %371 = vmatprep.subr.mxu0 0.0
    %372 = vmatpush2.msra.mxu0 0.0
    %373 = vmatprep.subr.mxu0 0.0
    %374 = vmatpush2.msra.mxu0 0.0
    %375 = vmatprep.subr.mxu0 0.0
    %376 = vmatpush2.msra.mxu0 0.0
    %377 = vmatprep.subr.mxu0 0.0
    %378 = vmatpush2.msra.mxu0 0.0
    %379 = vmatprep.subr.mxu0 0.0
    %380 = vmatpush2.msra.mxu0 0.0
    %381 = vmatprep.subr.mxu0 0.0
    %382 = vmatpush2.msra.mxu0 0.0
    %383 = vmatprep.subr.mxu0 0.0
    %384 = vmatpush2.msra.mxu0 0.0
    %385 = vmatprep.subr.mxu0 0.0
    %386 = vmatpush2.msra.mxu0 0.0
    %387 = vmatprep.subr.mxu0 0.0
    %388 = vmatpush2.msra.mxu0 0.0
    %389 = vmatprep.subr.mxu0 0.0
    %390 = vmatpush2.msra.mxu0 0.0
    %391 = vmatprep.mubr.f32.mxu0 0.0
    %392 = vmatmul.mubr.f32.gmra.mxu0 %v325
    %v393 = vpop.f32.mrf.mxu0
    %v394 = vadd.f32 %v321, %v393
    %v395 = vpop.f32.mrf.mxu0
    %396 = vdwg.mxu0
    %vm397 = vcmask 33792
    %398 = vst.msk [vmem:[#allocation7] sm:$0x3] %vm397, %v394
    // Predicated region
    $region46: #{tpu_custom_call.1} parent=1 // pred_check
      _
    $region47: #{tpu_custom_call.1} parent=1 // pred_check_branch
      %400 = sbr.rel (0) target = $region49
    $region48: #{tpu_custom_call.1} parent=1 // pred_region
      %s402 = ssub.s32 32, 32
      %403 = vsyncadd [#allocation4], %s402
      %s405 = sshll.u32 [#allocation7], 4
      %s406 = int_to_ptr.vmem [resolvable:$true] %s405
      %408 = dma.vmem_to_hbm [thread:$0]  %s406, 32, %s9, [#allocation4]
    $region49: #{tpu_custom_call.1} parent=1 // pred_fallthru
      _
    // Predicated region
    $region50: #{tpu_custom_call.1} parent=1 // pred_check
      _
    $region51: #{tpu_custom_call.1} parent=1 // pred_check_branch
      %410 = sbr.rel (0) target = $region53
    $region52: #{tpu_custom_call.1} parent=1 // pred_region
      %411 = dma.done [#allocation4], 32
    $region53: #{tpu_custom_call.1} parent=1 // pred_fallthru
      _
    %412 = vsyncpa [#allocation3], 1
    %413 = vsyncpa [#allocation6], 1
    %414 = vsyncpa [#allocation4], 1

</llo_original>
